<compile_context>
chip_gen: v6e
topology: v6e:2x2x1
jax: 0.10.0
libtpu: 0.0.40
codegen_flags: <defaults>
</compile_context>

<pallas_src>
import functools

import jax
import jax.numpy as jnp
from jax.experimental import pallas as pl
from jax.experimental.pallas import tpu as pltpu


def _round_up(x, m):
    return ((x + m - 1) // m) * m


def _netbftq_kernel(x_ref, w_ref, out_ref, *, layer_meta, out_dim):
    """MLP stack at uniform (TILE_B, n_cols) width.

    layer_meta: tuple of (w_row_off, b_row_off, k_rows, relu_after) per layer;
    all static Python ints -> static VMEM ref slices, no gathers.
    Layer 0 is the concat layer with the beta encoder pre-folded (no ReLU);
    the last layer is `predict` (no ReLU); hidden linears apply ReLU.
    Zero-padded rows/cols propagate exact zeros through matmul + ReLU, so only
    the final store is narrowed to out_dim.
    """
    h = x_ref[...]                                    # (TILE_B, feat), f32
    for (wo, bo, k_rows, relu_after) in layer_meta:   # unrolled (2-4 layers)
        w = w_ref[wo:wo + k_rows, :]                  # (k_rows, n_cols)
        b = w_ref[bo:bo + 1, :]                       # (1, n_cols) bias row
        h = jnp.dot(h, w, preferred_element_type=jnp.float32) + b
        if relu_after:
            h = jnp.maximum(h, 0.0)
    out_ref[...] = h[:, :out_dim]                     # narrow (masked) store


def prepare_params(params):
    """One-time prep: fold the beta encoder into the concat layer and pack all
    weights/biases into a single 128-lane-aligned f32 buffer (one DMA)."""
    wb, bb = params["beta_encoder"]                   # (1, Sb), (Sb,)
    wc, bc = params["concat_layer"]                   # (Ss+Sb, H0), (H0,)
    Sb = wb.shape[1]
    Ss = wc.shape[0] - Sb
    wcs, wcb = wc[:Ss], wc[Ss:]
    # cat(state, beta @ Wb + bb) @ Wc + bc
    #   == [state | beta] @ [Wcs ; Wb@Wcb] + (bb @ Wcb + bc)
    w0 = jnp.concatenate([wcs, wb @ wcb], axis=0)     # (Ss+1, H0)
    b0 = bb @ wcb + bc                                # (H0,)

    layer_list = [(w0, b0, False)]                    # fused concat: no ReLU
    for (w, b) in params["linears"]:
        layer_list.append((w, b, True))               # hidden: ReLU
    wp, bp = params["predict"]
    layer_list.append((wp, bp, False))                # predict: no ReLU

    feat = Ss + 1
    out_dim = wp.shape[1]

    # Uniform slab width: >= every layer's output width and every non-first
    # layer's input width, rounded to 128 lanes (free: VMEM pads lanes anyway).
    dims = [w.shape[1] for (w, _, _) in layer_list]
    dims += [w.shape[0] for (w, _, _) in layer_list[1:]]
    n_cols = _round_up(max(dims), 128)

    slabs, meta, row = [], [], 0
    for li, (w, b, relu_after) in enumerate(layer_list):
        k, n = w.shape
        slab_rows = _round_up(k, 8) if li == 0 else n_cols
        w_pad = jnp.zeros((slab_rows, n_cols), jnp.float32).at[:k, :n].set(w)
        b_pad = jnp.zeros((8, n_cols), jnp.float32).at[0, :n].set(b)
        slabs += [w_pad, b_pad]
        k_rows = k if li == 0 else n_cols             # rows consumed in-kernel
        meta.append((row, row + slab_rows, k_rows, relu_after))
        row += slab_rows + 8
    packed = jnp.concatenate(slabs, axis=0)           # single weight buffer

    return {"packed": packed, "meta": tuple(meta),
            "feat": feat, "out_dim": out_dim}


def netbftq_forward(x, prepared, *, max_tile_b=4096, core_parallel=True):
    """x: (B, 1, size_state + 1) float32.  Returns (B, 2 * n_actions) float32."""
    packed, meta = prepared["packed"], prepared["meta"]
    feat, out_dim = prepared["feat"], prepared["out_dim"]
    B = x.shape[0]
    assert x.shape[1] == 1 and x.shape[2] == feat, x.shape

    # Big batch tiles amortize the ~0.35us fixed per-grid-step overhead.
    tile_b = min(_round_up(B, 8), _round_up(max_tile_b, 8))
    if core_parallel and B >= 16:
        # Keep >=2 grid steps so both TensorCores get work on v7x.
        tile_b = min(tile_b, _round_up((B + 1) // 2, 8))
    Bp = _round_up(B, tile_b)
    if Bp != B:
        x = jnp.pad(x, ((0, Bp - B), (0, 0), (0, 0)))  # ragged tail only

    batch_sem = (getattr(pltpu, "CORE_PARALLEL", "parallel")
                 if core_parallel else "parallel")

    kernel = functools.partial(_netbftq_kernel, layer_meta=meta, out_dim=out_dim)
    out = pl.pallas_call(
        kernel,
        out_shape=jax.ShapeDtypeStruct((Bp, out_dim), jnp.float32),
        grid=(Bp // tile_b,),
        in_specs=[
            # x consumed directly; the size-1 middle dim is squeezed in-kernel.
            pl.BlockSpec((tile_b, None, feat), lambda i: (i, 0, 0)),
            # packed weights: constant block index -> DMA'd once, stays resident.
            pl.BlockSpec(packed.shape, lambda i: (0, 0)),
        ],
        out_specs=pl.BlockSpec((tile_b, out_dim), lambda i: (i, 0)),
        compiler_params=pltpu.CompilerParams(
            dimension_semantics=(batch_sem,),
            vmem_limit_bytes=32 * 1024 * 1024),
    )(x, packed)
    return out[:B] if Bp != B else out


def _xavier_uniform(key, shape):
    fan_in, fan_out = shape
    a = (6.0 / (fan_in + fan_out)) ** 0.5
    return jax.random.uniform(key, shape, jnp.float32, -a, a)


def make_params(key, size_state, size_beta_encoder, layers, n_actions):
    """Deterministic Xavier-uniform weights, zero biases (weights stored (in, out))."""
    sizes = list(layers) + [2 * n_actions]
    keys = jax.random.split(key, 3 + len(sizes))
    params = {
        "beta_encoder": (_xavier_uniform(keys[0], (1, size_beta_encoder)),
                         jnp.zeros((size_beta_encoder,), jnp.float32)),
        "concat_layer": (_xavier_uniform(
            keys[1], (size_state + size_beta_encoder, sizes[0])),
            jnp.zeros((sizes[0],), jnp.float32)),
        "linears": [],
        "predict": (_xavier_uniform(keys[2], (sizes[-2], sizes[-1])),
                    jnp.zeros((sizes[-1],), jnp.float32)),
    }
    for i in range(len(sizes) - 2):
        params["linears"].append(
            (_xavier_uniform(keys[3 + i], (sizes[i], sizes[i + 1])),
             jnp.zeros((sizes[i + 1],), jnp.float32)))
    return params


def reference_forward(x, params):
    """Pure-JAX mirror of the PyTorch forward for correctness checking."""
    state = x[:, 0, :-1]
    beta = x[:, :, -1]
    wb, bb = params["beta_encoder"]
    beta_enc = beta @ wb + bb
    wc, bc = params["concat_layer"]
    h = jnp.concatenate([state, beta_enc], axis=1) @ wc + bc
    for w, b in params["linears"]:
        h = jnp.maximum(h @ w + b, 0.0)
    wp, bp = params["predict"]
    out = h @ wp + bp
    return out.reshape(out.shape[0], -1)


if __name__ == "__main__":
    # Small config consistent with the module.
    size_state = 7
    size_beta_encoder = 3
    layers = [32, 32]
    n_actions = 4
    batch = 8

    key = jax.random.PRNGKey(0)
    k_x, k_p = jax.random.split(key)
    x = jax.random.normal(k_x, (batch, 1, size_state + 1), jnp.float32)
    params = make_params(k_p, size_state, size_beta_encoder, layers, n_actions)

    prepared = prepare_params(params)              # one-time, off the hot path

    try:
        out = jax.block_until_ready(
            netbftq_forward(x, prepared, core_parallel=True))
    except Exception:
        # CORE_PARALLEL not supported on this chip / jax version: fall back.
        out = jax.block_until_ready(
            netbftq_forward(x, prepared, core_parallel=False))

    ref = reference_forward(x, params)
    assert out.shape == (batch, 2 * n_actions), out.shape
    assert jnp.allclose(out, ref, atol=1e-5, rtol=1e-5), \
        float(jnp.max(jnp.abs(out - ref)))
    print("KERNEL_OK")
</pallas_src>

<mosaic_0001>
module attributes {stable_mosaic.version = 11 : i64} {
  func.func @_netbftq_kernel(%arg0: i32, %arg1: memref<8x1x8xf32, #tpu.memory_space<vmem>>, %arg2: memref<288x128xf32, #tpu.memory_space<vmem>>, %arg3: memref<8x8xf32, #tpu.memory_space<vmem>>) attributes {dimension_semantics = [#tpu.dimension_semantics<core_parallel>], iteration_bounds = array<i64: 1>, scalar_prefetch = 0 : i64, scratch_operands = 0 : i64, tpu.core_type = #tpu.core_type<tc>, window_params = [{transform_indices = @transform_0, window_bounds = array<i64: 8, 1, 8>}, {pipeline_mode = #tpu.pipeline_mode<synchronous>, transform_indices = @transform_1, window_bounds = array<i64: 288, 128>}, {transform_indices = @transform_2, window_bounds = array<i64: 8, 8>}]} {
    %c0 = arith.constant 0 : index
    %c0_0 = arith.constant 0 : index
    %c0_1 = arith.constant 0 : index
    %0 = vector.load %arg1[%c0, %c0_0, %c0_1] : memref<8x1x8xf32, #tpu.memory_space<vmem>>, vector<8x1x8xf32>
    %1 = vector.shape_cast %0 : vector<8x1x8xf32> to vector<8x8xf32>
    %c0_2 = arith.constant 0 : index
    %c0_3 = arith.constant 0 : index
    %2 = vector.load %arg2[%c0_2, %c0_3] : memref<288x128xf32, #tpu.memory_space<vmem>>, vector<8x128xf32>
    %c8 = arith.constant 8 : index
    %c0_4 = arith.constant 0 : index
    %3 = vector.load %arg2[%c8, %c0_4] : memref<288x128xf32, #tpu.memory_space<vmem>>, vector<1x128xf32>
    %cst = arith.constant dense<0.000000e+00> : vector<8x128xf32>
    %4 = tpu.matmul %1, %2, %cst {dimension_numbers = #tpu.dot_dimension_numbers<[1], [0], [0], [1], [0, 0, 1, 1], [], []>} : vector<8x8xf32>, vector<8x128xf32>, vector<8x128xf32> -> vector<8x128xf32>
    %5 = vector.broadcast %3 : vector<1x128xf32> to vector<8x128xf32>
    %6 = arith.addf %4, %5 : vector<8x128xf32>
    %c16 = arith.constant 16 : index
    %c0_5 = arith.constant 0 : index
    %7 = vector.load %arg2[%c16, %c0_5] : memref<288x128xf32, #tpu.memory_space<vmem>>, vector<128x128xf32>
    %c144 = arith.constant 144 : index
    %c0_6 = arith.constant 0 : index
    %8 = vector.load %arg2[%c144, %c0_6] : memref<288x128xf32, #tpu.memory_space<vmem>>, vector<1x128xf32>
    %cst_7 = arith.constant dense<0.000000e+00> : vector<8x128xf32>
    %9 = tpu.matmul %6, %7, %cst_7 {dimension_numbers = #tpu.dot_dimension_numbers<[1], [0], [0], [1], [0, 0, 1, 1], [], []>} : vector<8x128xf32>, vector<128x128xf32>, vector<8x128xf32> -> vector<8x128xf32>
    %10 = vector.broadcast %8 : vector<1x128xf32> to vector<8x128xf32>
    %11 = arith.addf %9, %10 : vector<8x128xf32>
    %cst_8 = arith.constant 0.000000e+00 : f32
    %12 = vector.broadcast %cst_8 : f32 to vector<8x128xf32>
    %13 = arith.maximumf %11, %12 : vector<8x128xf32>
    %c152 = arith.constant 152 : index
    %c0_9 = arith.constant 0 : index
    %14 = vector.load %arg2[%c152, %c0_9] : memref<288x128xf32, #tpu.memory_space<vmem>>, vector<128x128xf32>
    %c280 = arith.constant 280 : index
    %c0_10 = arith.constant 0 : index
    %15 = vector.load %arg2[%c280, %c0_10] : memref<288x128xf32, #tpu.memory_space<vmem>>, vector<1x128xf32>
    %cst_11 = arith.constant dense<0.000000e+00> : vector<8x128xf32>
    %16 = tpu.matmul %13, %14, %cst_11 {dimension_numbers = #tpu.dot_dimension_numbers<[1], [0], [0], [1], [0, 0, 1, 1], [], []>} : vector<8x128xf32>, vector<128x128xf32>, vector<8x128xf32> -> vector<8x128xf32>
    %17 = vector.broadcast %15 : vector<1x128xf32> to vector<8x128xf32>
    %18 = arith.addf %16, %17 : vector<8x128xf32>
    %19 = vector.extract_strided_slice %18 {offsets = [0, 0], sizes = [8, 8], strides = [1, 1]} : vector<8x128xf32> to vector<8x8xf32>
    %c0_12 = arith.constant 0 : index
    %c0_13 = arith.constant 0 : index
    %20 = vector.load %arg3[%c0_12, %c0_13] : memref<8x8xf32, #tpu.memory_space<vmem>>, vector<8x8xf32>
    tpu.vector_store %arg3[%c0_12, %c0_13], %19 {strides = array<i32>} : memref<8x8xf32, #tpu.memory_space<vmem>>, vector<8x8xf32>,
    return
  }
  func.func @transform_0(%arg0: i32) -> (i32, i32, i32) {
    %c0_i32 = arith.constant 0 : i32
    %c0_i32_0 = arith.constant 0 : i32
    %c0_i32_1 = arith.constant 0 : i32
    return %arg0, %c0_i32, %c0_i32_0 : i32, i32, i32
  }
  func.func @transform_1(%arg0: i32) -> (i32, i32) {
    %c0_i32 = arith.constant 0 : i32
    %c0_i32_0 = arith.constant 0 : i32
    %c0_i32_1 = arith.constant 0 : i32
    return %c0_i32, %c0_i32_0 : i32, i32
  }
  func.func @transform_2(%arg0: i32) -> (i32, i32) {
    %c0_i32 = arith.constant 0 : i32
    %c0_i32_0 = arith.constant 0 : i32
    return %arg0, %c0_i32 : i32, i32
  }
}

module attributes {stable_mosaic.version = 11 : i64} {
  func.func @_netbftq_kernel(%arg0: i32, %arg1: memref<8x1x8xf32, #tpu.memory_space<vmem>>, %arg2: memref<288x128xf32, #tpu.memory_space<vmem>>, %arg3: memref<8x8xf32, #tpu.memory_space<vmem>>) attributes {dimension_semantics = [#tpu.dimension_semantics<parallel>], iteration_bounds = array<i64: 1>, scalar_prefetch = 0 : i64, scratch_operands = 0 : i64, tpu.core_type = #tpu.core_type<tc>, window_params = [{transform_indices = @transform_0, window_bounds = array<i64: 8, 1, 8>}, {pipeline_mode = #tpu.pipeline_mode<synchronous>, transform_indices = @transform_1, window_bounds = array<i64: 288, 128>}, {transform_indices = @transform_2, window_bounds = array<i64: 8, 8>}]} {
    %c0 = arith.constant 0 : index
    %c0_0 = arith.constant 0 : index
    %c0_1 = arith.constant 0 : index
    %0 = vector.load %arg1[%c0, %c0_0, %c0_1] : memref<8x1x8xf32, #tpu.memory_space<vmem>>, vector<8x1x8xf32>
    %1 = vector.shape_cast %0 : vector<8x1x8xf32> to vector<8x8xf32>
    %c0_2 = arith.constant 0 : index
    %c0_3 = arith.constant 0 : index
    %2 = vector.load %arg2[%c0_2, %c0_3] : memref<288x128xf32, #tpu.memory_space<vmem>>, vector<8x128xf32>
    %c8 = arith.constant 8 : index
    %c0_4 = arith.constant 0 : index
    %3 = vector.load %arg2[%c8, %c0_4] : memref<288x128xf32, #tpu.memory_space<vmem>>, vector<1x128xf32>
    %cst = arith.constant dense<0.000000e+00> : vector<8x128xf32>
    %4 = tpu.matmul %1, %2, %cst {dimension_numbers = #tpu.dot_dimension_numbers<[1], [0], [0], [1], [0, 0, 1, 1], [], []>} : vector<8x8xf32>, vector<8x128xf32>, vector<8x128xf32> -> vector<8x128xf32>
    %5 = vector.broadcast %3 : vector<1x128xf32> to vector<8x128xf32>
    %6 = arith.addf %4, %5 : vector<8x128xf32>
    %c16 = arith.constant 16 : index
    %c0_5 = arith.constant 0 : index
    %7 = vector.load %arg2[%c16, %c0_5] : memref<288x128xf32, #tpu.memory_space<vmem>>, vector<128x128xf32>
    %c144 = arith.constant 144 : index
    %c0_6 = arith.constant 0 : index
    %8 = vector.load %arg2[%c144, %c0_6] : memref<288x128xf32, #tpu.memory_space<vmem>>, vector<1x128xf32>
    %cst_7 = arith.constant dense<0.000000e+00> : vector<8x128xf32>
    %9 = tpu.matmul %6, %7, %cst_7 {dimension_numbers = #tpu.dot_dimension_numbers<[1], [0], [0], [1], [0, 0, 1, 1], [], []>} : vector<8x128xf32>, vector<128x128xf32>, vector<8x128xf32> -> vector<8x128xf32>
    %10 = vector.broadcast %8 : vector<1x128xf32> to vector<8x128xf32>
    %11 = arith.addf %9, %10 : vector<8x128xf32>
    %cst_8 = arith.constant 0.000000e+00 : f32
    %12 = vector.broadcast %cst_8 : f32 to vector<8x128xf32>
    %13 = arith.maximumf %11, %12 : vector<8x128xf32>
    %c152 = arith.constant 152 : index
    %c0_9 = arith.constant 0 : index
    %14 = vector.load %arg2[%c152, %c0_9] : memref<288x128xf32, #tpu.memory_space<vmem>>, vector<128x128xf32>
    %c280 = arith.constant 280 : index
    %c0_10 = arith.constant 0 : index
    %15 = vector.load %arg2[%c280, %c0_10] : memref<288x128xf32, #tpu.memory_space<vmem>>, vector<1x128xf32>
    %cst_11 = arith.constant dense<0.000000e+00> : vector<8x128xf32>
    %16 = tpu.matmul %13, %14, %cst_11 {dimension_numbers = #tpu.dot_dimension_numbers<[1], [0], [0], [1], [0, 0, 1, 1], [], []>} : vector<8x128xf32>, vector<128x128xf32>, vector<8x128xf32> -> vector<8x128xf32>
    %17 = vector.broadcast %15 : vector<1x128xf32> to vector<8x128xf32>
    %18 = arith.addf %16, %17 : vector<8x128xf32>
    %19 = vector.extract_strided_slice %18 {offsets = [0, 0], sizes = [8, 8], strides = [1, 1]} : vector<8x128xf32> to vector<8x8xf32>
    %c0_12 = arith.constant 0 : index
    %c0_13 = arith.constant 0 : index
    %20 = vector.load %arg3[%c0_12, %c0_13] : memref<8x8xf32, #tpu.memory_space<vmem>>, vector<8x8xf32>
    tpu.vector_store %arg3[%c0_12, %c0_13], %19 {strides = array<i32>} : memref<8x8xf32, #tpu.memory_space<vmem>>, vector<8x8xf32>,
    return
  }
  func.func @transform_0(%arg0: i32) -> (i32, i32, i32) {
    %c0_i32 = arith.constant 0 : i32
    %c0_i32_0 = arith.constant 0 : i32
    %c0_i32_1 = arith.constant 0 : i32
    return %arg0, %c0_i32, %c0_i32_0 : i32, i32, i32
  }
  func.func @transform_1(%arg0: i32) -> (i32, i32) {
    %c0_i32 = arith.constant 0 : i32
    %c0_i32_0 = arith.constant 0 : i32
    %c0_i32_1 = arith.constant 0 : i32
    return %c0_i32, %c0_i32_0 : i32, i32
  }
  func.func @transform_2(%arg0: i32) -> (i32, i32) {
    %c0_i32 = arith.constant 0 : i32
    %c0_i32_0 = arith.constant 0 : i32
    return %arg0, %c0_i32 : i32, i32
  }
}

</mosaic_0001>

<llo_original>
// kernel: tpu_custom_call.1
$region0: #{tpu_custom_call.1}
  #allocation0 [shape = 'u32[]', space=smem, size = 0x4, offset = 0x4, fixed_abs, tag = 'smem constant byte address 0x4 - core index']
  #allocation1 [shape = 'u32[144,128]{1,0:T(1,128)}', space=vmem, size = 0x12000, scoped, tag = 'internal scratch']
  %s0 = inlined_call_operand.hbm [shape: f32[8,1,8], index: 0, kind: input, shape index: {}]
  %s1 = inlined_call_operand.hbm [shape: f32[288,128], index: 1, kind: input, shape index: {}]
  %s2 = inlined_call_operand.hbm [shape: f32[8,8], index: 2, kind: output, shape index: {}]
  %s3 = sld [smem:[#allocation0]]
  $region26: #{tpu_custom_call.1} parent=0
    _
  %s5 = ssub.s32 1, %s3
  %s6 = scalar_select 0, %s5, %s3
  $region1: #{tpu_custom_call.1} parent=0
    #allocation2 [shape = 'u8[4096]{0}', space=vmem, size = 0x1000, scoped, tag = 'input window, operand 0, single buffered']
    #allocation3 [shape = 's32[1]{0}', space=sflag, size = 0x4, scoped, tag = 'scoped memory for tpu_custom_call.1']
    #allocation4 [shape = 's32[1]{0}', space=sflag, size = 0x4, scoped, tag = 'scoped memory for tpu_custom_call.1']
    #allocation5 [shape = 'u8[147456]{0}', space=vmem, size = 0x24000, scoped, tag = 'input window, operand 1, single buffered']
    #allocation6 [shape = 's32[1]{0}', space=sflag, size = 0x4, scoped, tag = 'scoped memory for tpu_custom_call.1']
    #allocation7 [shape = 'u8[4096]{0}', space=vmem, size = 0x1000, scoped, tag = 'output window, operand 0, single buffered']
    %7 = vsyncpa [#allocation3], 0
    %8 = vsyncpa [#allocation6], 0
    %9 = vsyncpa [#allocation4], 0
    // Predicated region
    $region2: #{tpu_custom_call.1} parent=1 // pred_check
      _
    $region3: #{tpu_custom_call.1} parent=1 // pred_check_branch
      %11 = sbr.rel (0) target = $region5
    $region4: #{tpu_custom_call.1} parent=1 // pred_region
      %s12 = smul.u32 8, %s6
      %s14 = ssub.s32 128, 128
      %15 = vsyncadd [#allocation3], %s14
      %s16 = smul.addr %s12, 16
      %s17 = scalar_lea.hbm %s0, %s16
      %s18 = sshll.u32 [#allocation2], 4
      %s19 = int_to_ptr.vmem [resolvable:$true] %s18
      %24 = dma.hbm_to_vmem [thread:$0]  %s17, 128, %s19, [#allocation3], 16, 16, 1
    $region5: #{tpu_custom_call.1} parent=1 // pred_fallthru
      _
    // Predicated region
    $region6: #{tpu_custom_call.1} parent=1 // pred_check
      _
    $region7: #{tpu_custom_call.1} parent=1 // pred_check_branch
      %26 = sbr.rel (0) target = $region9
    $region8: #{tpu_custom_call.1} parent=1 // pred_region
      %s28 = ssub.s32 4608, 4608
      %29 = vsyncadd [#allocation6], %s28
      %s30 = sshll.u32 [#allocation5], 4
      %s31 = int_to_ptr.vmem [resolvable:$true] %s30
      %36 = dma.hbm_to_vmem [thread:$0]  %s1, 4608, %s31, [#allocation6], 128, 128, 8
    $region9: #{tpu_custom_call.1} parent=1 // pred_fallthru
      _
    // Predicated region
    $region10: #{tpu_custom_call.1} parent=1 // pred_check
      _
    $region11: #{tpu_custom_call.1} parent=1 // pred_check_branch
      %38 = sbr.rel (0) target = $region13
    $region12: #{tpu_custom_call.1} parent=1 // pred_region
      %39 = dma.done [#allocation3], 128
    $region13: #{tpu_custom_call.1} parent=1 // pred_fallthru
      _
    // Predicated region
    $region14: #{tpu_custom_call.1} parent=1 // pred_check
      _
    $region15: #{tpu_custom_call.1} parent=1 // pred_check_branch
      %41 = sbr.rel (0) target = $region17
    $region16: #{tpu_custom_call.1} parent=1 // pred_region
      %42 = dma.done [#allocation6], 4608
    $region17: #{tpu_custom_call.1} parent=1 // pred_fallthru
      _
    %s43 = smul.u32 8, %s6
    %v44 = vld [vmem:[#allocation2] sm:$0x1]
    %v45 = vld [vmem:[#allocation2 + $0x1] sm:$0x1]
    %v46 = vld [vmem:[#allocation2 + $0x2] sm:$0x1]
    %v47 = vld [vmem:[#allocation2 + $0x3] sm:$0x1]
    %v48 = vld [vmem:[#allocation2 + $0x4] sm:$0x1]
    %v49 = vld [vmem:[#allocation2 + $0x5] sm:$0x1]
    %v50 = vld [vmem:[#allocation2 + $0x6] sm:$0x1]
    %v51 = vld [vmem:[#allocation2 + $0x7] sm:$0x1]
    %v52 = vld [vmem:[#allocation5] sm:$0xff]
    %v53 = vld [vmem:[#allocation5 + $0x8] sm:$0x1]
    %v54 = vlaneseq
    %v55 = vshrl.u32 %v54, 7
    %v56 = vsub.s32 0, %v55
    %v57 = vrot.slane %v53, %v56
    %v66 = vcombine.low %v44, %v45
    %v67 = vcombine.low %v46, %v47
    %v68 = vcombine.low %v48, %v49
    %v69 = vcombine.low %v50, %v51
    %v71 = vunpack.c.l.s4 1966171168
    %v72 = vunpack.c.0.s8 %v71
    %v73 = vlaneseq
    %v74 = vshrl.u32 %v73, 7
    %v75 = vsub.s32 %v72, %v74
    %v76 = vrot.slane %v66, %v75
    %v78 = vunpack.c.l.s4 1966171168
    %v79 = vunpack.c.0.s8 %v78
    %v80 = vlaneseq
    %v81 = vshrl.u32 %v80, 7
    %v82 = vsub.s32 %v79, %v81
    %v83 = vrot.slane %v67, %v82
    %v85 = vunpack.c.l.s4 1966171168
    %v86 = vunpack.c.0.s8 %v85
    %v87 = vlaneseq
    %v88 = vshrl.u32 %v87, 7
    %v89 = vsub.s32 %v86, %v88
    %v90 = vrot.slane %v68, %v89
    %v92 = vunpack.c.l.s4 1966171168
    %v93 = vunpack.c.0.s8 %v92
    %v94 = vlaneseq
    %v95 = vshrl.u32 %v94, 7
    %v96 = vsub.s32 %v93, %v95
    %v97 = vrot.slane %v69, %v96
    %v98 = vcombine.low %v76, %v83
    %v99 = vcombine.low %v90, %v97
    %v101 = vunpack.c.l.s4 1966171168
    %v102 = vunpack.c.0.s8 %v101
    %v103 = vlaneseq
    %v104 = vshrl.u32 %v103, 7
    %v105 = vsub.s32 %v102, %v104
    %v106 = vrot.slane %v98, %v105
    %v108 = vunpack.c.l.s4 1966171168
    %v109 = vunpack.c.0.s8 %v108
    %v110 = vlaneseq
    %v111 = vshrl.u32 %v110, 7
    %v112 = vsub.s32 %v109, %v111
    %v113 = vrot.slane %v99, %v112
    %v114 = vcombine.low %v106, %v113
    %vm115 = vcmask 64512
    %v116 = vsel %vm115, %v114, 0
    %118 = vmatprep.subr.mxu0 0.0
    %119 = vmatpush1.msra.mxu0 0.0
    %120 = vmatprep.subr.mxu0 0.0
    %121 = vmatpush1.msra.mxu0 0.0
    %122 = vmatprep.subr.mxu0 0.0
    %123 = vmatpush1.msra.mxu0 0.0
    %124 = vmatprep.subr.mxu0 0.0
    %125 = vmatpush1.msra.mxu0 0.0
    %126 = vmatprep.subr.mxu0 0.0
    %127 = vmatpush1.msra.mxu0 0.0
    %128 = vmatprep.subr.mxu0 0.0
    %129 = vmatpush1.msra.mxu0 0.0
    %130 = vmatprep.subr.mxu0 0.0
    %131 = vmatpush1.msra.mxu0 0.0
    %132 = vmatprep.subr.mxu0 0.0
    %133 = vmatpush1.msra.mxu0 0.0
    %134 = vmatprep.subr.mxu0 0.0
    %135 = vmatpush1.msra.mxu0 0.0
    %136 = vmatprep.subr.mxu0 0.0
    %137 = vmatpush1.msra.mxu0 0.0
    %138 = vmatprep.subr.mxu0 0.0
    %139 = vmatpush1.msra.mxu0 0.0
    %140 = vmatprep.subr.mxu0 0.0
    %141 = vmatpush1.msra.mxu0 0.0
    %142 = vmatprep.subr.mxu0 0.0
    %143 = vmatpush1.msra.mxu0 0.0
    %144 = vmatprep.subr.mxu0 0.0
    %145 = vmatpush1.msra.mxu0 0.0
    %146 = vmatprep.subr.mxu0 0.0
    %147 = vmatpush1.msra.mxu0 0.0
    %148 = vmatprep.subr.mxu0 0.0
    %149 = vmatpush1.msra.mxu0 %v52
    %150 = vmatprep.subr.mxu0 0.0
    %151 = vmatpush2.msra.mxu0 0.0
    %152 = vmatprep.subr.mxu0 0.0
    %153 = vmatpush2.msra.mxu0 0.0
    %154 = vmatprep.subr.mxu0 0.0
    %155 = vmatpush2.msra.mxu0 0.0
    %156 = vmatprep.subr.mxu0 0.0
    %157 = vmatpush2.msra.mxu0 0.0
    %158 = vmatprep.subr.mxu0 0.0
    %159 = vmatpush2.msra.mxu0 0.0
    %160 = vmatprep.subr.mxu0 0.0
    %161 = vmatpush2.msra.mxu0 0.0
    %162 = vmatprep.subr.mxu0 0.0
    %163 = vmatpush2.msra.mxu0 0.0
    %164 = vmatprep.subr.mxu0 0.0
    %165 = vmatpush2.msra.mxu0 0.0
    %166 = vmatprep.subr.mxu0 0.0
    %167 = vmatpush2.msra.mxu0 0.0
    %168 = vmatprep.subr.mxu0 0.0
    %169 = vmatpush2.msra.mxu0 0.0
    %170 = vmatprep.subr.mxu0 0.0
    %171 = vmatpush2.msra.mxu0 0.0
    %172 = vmatprep.subr.mxu0 0.0
    %173 = vmatpush2.msra.mxu0 0.0
    %174 = vmatprep.subr.mxu0 0.0
    %175 = vmatpush2.msra.mxu0 0.0
    %176 = vmatprep.subr.mxu0 0.0
    %177 = vmatpush2.msra.mxu0 0.0
    %178 = vmatprep.subr.mxu0 0.0
    %179 = vmatpush2.msra.mxu0 0.0
    %180 = vmatprep.subr.mxu0 0.0
    %181 = vmatpush2.msra.mxu0 0.0
    %182 = vmatprep.mubr.f32.mxu0 0.0
    %183 = vmatmul.mubr.f32.gmra.mxu0 %v116
    %v184 = vpop.f32.mrf.mxu0
    %v185 = vadd.f32 %v57, %v184
    %v186 = vpop.f32.mrf.mxu0
    %187 = vdwg.mxu0
    %v188 = vld [vmem:[#allocation5 + $0x10] sm:$0xff]
    %v189 = vld [vmem:[#allocation5 + $0x18] sm:$0xff]
    %v190 = vld [vmem:[#allocation5 + $0x20] sm:$0xff]
    %v191 = vld [vmem:[#allocation5 + $0x28] sm:$0xff]
    %v192 = vld [vmem:[#allocation5 + $0x30] sm:$0xff]
    %v193 = vld [vmem:[#allocation5 + $0x38] sm:$0xff]
    %v194 = vld [vmem:[#allocation5 + $0x40] sm:$0xff]
    %v195 = vld [vmem:[#allocation5 + $0x48] sm:$0xff]
    %v196 = vld [vmem:[#allocation5 + $0x50] sm:$0xff]
    %v197 = vld [vmem:[#allocation5 + $0x58] sm:$0xff]
    %v198 = vld [vmem:[#allocation5 + $0x60] sm:$0xff]
    %v199 = vld [vmem:[#allocation5 + $0x68] sm:$0xff]
    %v200 = vld [vmem:[#allocation5 + $0x70] sm:$0xff]
    %v201 = vld [vmem:[#allocation5 + $0x78] sm:$0xff]
    %v202 = vld [vmem:[#allocation5 + $0x80] sm:$0xff]
    %v203 = vld [vmem:[#allocation5 + $0x88] sm:$0xff]
    %v204 = vld [vmem:[#allocation5 + $0x90] sm:$0x1]
    %v205 = vlaneseq
    %v206 = vshrl.u32 %v205, 7
    %v207 = vsub.s32 0, %v206
    %v208 = vrot.slane %v204, %v207
    %209 = vmatprep.subr.mxu0 0.0
    %210 = vmatpush1.msra.mxu0 %v203
    %211 = vmatprep.subr.mxu0 0.0
    %212 = vmatpush1.msra.mxu0 %v202
    %213 = vmatprep.subr.mxu0 0.0
    %214 = vmatpush1.msra.mxu0 %v201
    %215 = vmatprep.subr.mxu0 0.0
    %216 = vmatpush1.msra.mxu0 %v200
    %217 = vmatprep.subr.mxu0 0.0
    %218 = vmatpush1.msra.mxu0 %v199
    %219 = vmatprep.subr.mxu0 0.0
    %220 = vmatpush1.msra.mxu0 %v198
    %221 = vmatprep.subr.mxu0 0.0
    %222 = vmatpush1.msra.mxu0 %v197
    %223 = vmatprep.subr.mxu0 0.0
    %224 = vmatpush1.msra.mxu0 %v196
    %225 = vmatprep.subr.mxu0 0.0
    %226 = vmatpush1.msra.mxu0 %v195
    %227 = vmatprep.subr.mxu0 0.0
    %228 = vmatpush1.msra.mxu0 %v194
    %229 = vmatprep.subr.mxu0 0.0
    %230 = vmatpush1.msra.mxu0 %v193
    %231 = vmatprep.subr.mxu0 0.0
    %232 = vmatpush1.msra.mxu0 %v192
    %233 = vmatprep.subr.mxu0 0.0
    %234 = vmatpush1.msra.mxu0 %v191
    %235 = vmatprep.subr.mxu0 0.0
    %236 = vmatpush1.msra.mxu0 %v190
    %237 = vmatprep.subr.mxu0 0.0
    %238 = vmatpush1.msra.mxu0 %v189
    %239 = vmatprep.subr.mxu0 0.0
    %240 = vmatpush1.msra.mxu0 %v188
    %241 = vmatprep.subr.mxu0 0.0
    %242 = vmatpush2.msra.mxu0 0.0
    %243 = vmatprep.subr.mxu0 0.0
    %244 = vmatpush2.msra.mxu0 0.0
    %245 = vmatprep.subr.mxu0 0.0
    %246 = vmatpush2.msra.mxu0 0.0
    %247 = vmatprep.subr.mxu0 0.0
    %248 = vmatpush2.msra.mxu0 0.0
    %249 = vmatprep.subr.mxu0 0.0
    %250 = vmatpush2.msra.mxu0 0.0
    %251 = vmatprep.subr.mxu0 0.0
    %252 = vmatpush2.msra.mxu0 0.0
    %253 = vmatprep.subr.mxu0 0.0
    %254 = vmatpush2.msra.mxu0 0.0
    %255 = vmatprep.subr.mxu0 0.0
    %256 = vmatpush2.msra.mxu0 0.0
    %257 = vmatprep.subr.mxu0 0.0
    %258 = vmatpush2.msra.mxu0 0.0
    %259 = vmatprep.subr.mxu0 0.0
    %260 = vmatpush2.msra.mxu0 0.0
    %261 = vmatprep.subr.mxu0 0.0
    %262 = vmatpush2.msra.mxu0 0.0
    %263 = vmatprep.subr.mxu0 0.0
    %264 = vmatpush2.msra.mxu0 0.0
    %265 = vmatprep.subr.mxu0 0.0
    %266 = vmatpush2.msra.mxu0 0.0
    %267 = vmatprep.subr.mxu0 0.0
    %268 = vmatpush2.msra.mxu0 0.0
    %269 = vmatprep.subr.mxu0 0.0
    %270 = vmatpush2.msra.mxu0 0.0
    %271 = vmatprep.subr.mxu0 0.0
    %272 = vmatpush2.msra.mxu0 0.0
    %273 = vmatprep.mubr.f32.mxu0 0.0
    %274 = vmatmul.mubr.f32.gmra.mxu0 %v185
    %v275 = vpop.f32.mrf.mxu0
    %v276 = vadd.f32 %v208, %v275
    %v277 = vpop.f32.mrf.mxu0
    %278 = vdwg.mxu0
    %v279 = vmax.f32 %v276, 0.0
    %v280 = vld [vmem:[#allocation5 + $0x98] sm:$0xff]
    %v281 = vld [vmem:[#allocation5 + $0xa0] sm:$0xff]
    %v282 = vld [vmem:[#allocation5 + $0xa8] sm:$0xff]
    %v283 = vld [vmem:[#allocation5 + $0xb0] sm:$0xff]
    %v284 = vld [vmem:[#allocation5 + $0xb8] sm:$0xff]
    %v285 = vld [vmem:[#allocation5 + $0xc0] sm:$0xff]
    %v286 = vld [vmem:[#allocation5 + $0xc8] sm:$0xff]
    %v287 = vld [vmem:[#allocation5 + $0xd0] sm:$0xff]
    %v288 = vld [vmem:[#allocation5 + $0xd8] sm:$0xff]
    %v289 = vld [vmem:[#allocation5 + $0xe0] sm:$0xff]
    %v290 = vld [vmem:[#allocation5 + $0xe8] sm:$0xff]
    %v291 = vld [vmem:[#allocation5 + $0xf0] sm:$0xff]
    %v292 = vld [vmem:[#allocation5 + $0xf8] sm:$0xff]
    %v293 = vld [vmem:[#allocation5 + $0x100] sm:$0xff]
    %v294 = vld [vmem:[#allocation5 + $0x108] sm:$0xff]
    %v295 = vld [vmem:[#allocation5 + $0x110] sm:$0xff]
    %v296 = vld [vmem:[#allocation5 + $0x118] sm:$0x1]
    %v297 = vlaneseq
    %v298 = vshrl.u32 %v297, 7
    %v299 = vsub.s32 0, %v298
    %v300 = vrot.slane %v296, %v299
    %301 = vmatprep.subr.mxu0 0.0
    %302 = vmatpush1.msra.mxu0 %v295
    %303 = vmatprep.subr.mxu0 0.0
    %304 = vmatpush1.msra.mxu0 %v294
    %305 = vmatprep.subr.mxu0 0.0
    %306 = vmatpush1.msra.mxu0 %v293
    %307 = vmatprep.subr.mxu0 0.0
    %308 = vmatpush1.msra.mxu0 %v292
    %309 = vmatprep.subr.mxu0 0.0
    %310 = vmatpush1.msra.mxu0 %v291
    %311 = vmatprep.subr.mxu0 0.0
    %312 = vmatpush1.msra.mxu0 %v290
    %313 = vmatprep.subr.mxu0 0.0
    %314 = vmatpush1.msra.mxu0 %v289
    %315 = vmatprep.subr.mxu0 0.0
    %316 = vmatpush1.msra.mxu0 %v288
    %317 = vmatprep.subr.mxu0 0.0
    %318 = vmatpush1.msra.mxu0 %v287
    %319 = vmatprep.subr.mxu0 0.0
    %320 = vmatpush1.msra.mxu0 %v286
    %321 = vmatprep.subr.mxu0 0.0
    %322 = vmatpush1.msra.mxu0 %v285
    %323 = vmatprep.subr.mxu0 0.0
    %324 = vmatpush1.msra.mxu0 %v284
    %325 = vmatprep.subr.mxu0 0.0
    %326 = vmatpush1.msra.mxu0 %v283
    %327 = vmatprep.subr.mxu0 0.0
    %328 = vmatpush1.msra.mxu0 %v282
    %329 = vmatprep.subr.mxu0 0.0
    %330 = vmatpush1.msra.mxu0 %v281
    %331 = vmatprep.subr.mxu0 0.0
    %332 = vmatpush1.msra.mxu0 %v280
    %333 = vmatprep.subr.mxu0 0.0
    %334 = vmatpush2.msra.mxu0 0.0
    %335 = vmatprep.subr.mxu0 0.0
    %336 = vmatpush2.msra.mxu0 0.0
    %337 = vmatprep.subr.mxu0 0.0
    %338 = vmatpush2.msra.mxu0 0.0
    %339 = vmatprep.subr.mxu0 0.0
    %340 = vmatpush2.msra.mxu0 0.0
    %341 = vmatprep.subr.mxu0 0.0
    %342 = vmatpush2.msra.mxu0 0.0
    %343 = vmatprep.subr.mxu0 0.0
    %344 = vmatpush2.msra.mxu0 0.0
    %345 = vmatprep.subr.mxu0 0.0
    %346 = vmatpush2.msra.mxu0 0.0
    %347 = vmatprep.subr.mxu0 0.0
    %348 = vmatpush2.msra.mxu0 0.0
    %349 = vmatprep.subr.mxu0 0.0
    %350 = vmatpush2.msra.mxu0 0.0
    %351 = vmatprep.subr.mxu0 0.0
    %352 = vmatpush2.msra.mxu0 0.0
    %353 = vmatprep.subr.mxu0 0.0
    %354 = vmatpush2.msra.mxu0 0.0
    %355 = vmatprep.subr.mxu0 0.0
    %356 = vmatpush2.msra.mxu0 0.0
    %357 = vmatprep.subr.mxu0 0.0
    %358 = vmatpush2.msra.mxu0 0.0
    %359 = vmatprep.subr.mxu0 0.0
    %360 = vmatpush2.msra.mxu0 0.0
    %361 = vmatprep.subr.mxu0 0.0
    %362 = vmatpush2.msra.mxu0 0.0
    %363 = vmatprep.subr.mxu0 0.0
    %364 = vmatpush2.msra.mxu0 0.0
    %365 = vmatprep.mubr.f32.mxu0 0.0
    %366 = vmatmul.mubr.f32.gmra.mxu0 %v279
    %v367 = vpop.f32.mrf.mxu0
    %v368 = vadd.f32 %v300, %v367
    %v369 = vpop.f32.mrf.mxu0
    %370 = vdwg.mxu0
    %371 = vst.msk [vmem:[#allocation7] sm:$0xff] %vm115, %v368
    // Predicated region
    $region18: #{tpu_custom_call.1} parent=1 // pred_check
      _
    $region19: #{tpu_custom_call.1} parent=1 // pred_check_branch
      %373 = sbr.rel (0) target = $region21
    $region20: #{tpu_custom_call.1} parent=1 // pred_region
      %s375 = ssub.s32 128, 128
      %376 = vsyncadd [#allocation4], %s375
      %s377 = smul.addr %s6, 128
      %s378 = scalar_lea.hbm %s2, %s377
      %s380 = sshll.u32 [#allocation7], 4
      %s381 = int_to_ptr.vmem [resolvable:$true] %s380
      %383 = dma.vmem_to_hbm [thread:$0]  %s381, 128, %s378, [#allocation4]
    $region21: #{tpu_custom_call.1} parent=1 // pred_fallthru
      _
    // Predicated region
    $region22: #{tpu_custom_call.1} parent=1 // pred_check
      _
    $region23: #{tpu_custom_call.1} parent=1 // pred_check_branch
      %385 = sbr.rel (0) target = $region25
    $region24: #{tpu_custom_call.1} parent=1 // pred_region
      %386 = dma.done [#allocation4], 128
    $region25: #{tpu_custom_call.1} parent=1 // pred_fallthru
      _
    %387 = vsyncpa [#allocation3], 1
    %388 = vsyncpa [#allocation6], 1
    %389 = vsyncpa [#allocation4], 1

// kernel: tpu_custom_call.1
$region0: #{tpu_custom_call.1}
  #allocation0 [shape = 'u32[]', space=smem, size = 0x4, offset = 0x4, fixed_abs, tag = 'smem constant byte address 0x4 - core index']
  #allocation1 [shape = 'u32[144,128]{1,0:T(1,128)}', space=vmem, size = 0x12000, scoped, tag = 'internal scratch']
  %s0 = inlined_call_operand.hbm [shape: f32[8,1,8], index: 0, kind: input, shape index: {}]
  %s1 = inlined_call_operand.hbm [shape: f32[288,128], index: 1, kind: input, shape index: {}]
  %s2 = inlined_call_operand.hbm [shape: f32[8,8], index: 2, kind: output, shape index: {}]
  %s3 = sld [smem:[#allocation0]]
  $region26: #{tpu_custom_call.1} parent=0
    _
  %s5 = ssub.s32 1, %s3
  %s6 = scalar_select 0, %s5, %s3
  $region1: #{tpu_custom_call.1} parent=0
    #allocation2 [shape = 'u8[4096]{0}', space=vmem, size = 0x1000, scoped, tag = 'input window, operand 0, single buffered']
    #allocation3 [shape = 's32[1]{0}', space=sflag, size = 0x4, scoped, tag = 'scoped memory for tpu_custom_call.1']
    #allocation4 [shape = 's32[1]{0}', space=sflag, size = 0x4, scoped, tag = 'scoped memory for tpu_custom_call.1']
    #allocation5 [shape = 'u8[147456]{0}', space=vmem, size = 0x24000, scoped, tag = 'input window, operand 1, single buffered']
    #allocation6 [shape = 's32[1]{0}', space=sflag, size = 0x4, scoped, tag = 'scoped memory for tpu_custom_call.1']
    #allocation7 [shape = 'u8[4096]{0}', space=vmem, size = 0x1000, scoped, tag = 'output window, operand 0, single buffered']
    %7 = vsyncpa [#allocation3], 0
    %8 = vsyncpa [#allocation6], 0
    %9 = vsyncpa [#allocation4], 0
    // Predicated region
    $region2: #{tpu_custom_call.1} parent=1 // pred_check
      _
    $region3: #{tpu_custom_call.1} parent=1 // pred_check_branch
      %11 = sbr.rel (0) target = $region5
    $region4: #{tpu_custom_call.1} parent=1 // pred_region
      %s13 = ssub.s32 128, 128
      %14 = vsyncadd [#allocation3], %s13
      %s15 = sshll.u32 [#allocation2], 4
      %s16 = int_to_ptr.vmem [resolvable:$true] %s15
      %21 = dma.hbm_to_vmem [thread:$0]  %s0, 128, %s16, [#allocation3], 16, 16, 1
    $region5: #{tpu_custom_call.1} parent=1 // pred_fallthru
      _
    // Predicated region
    $region6: #{tpu_custom_call.1} parent=1 // pred_check
      _
    $region7: #{tpu_custom_call.1} parent=1 // pred_check_branch
      %23 = sbr.rel (0) target = $region9
    $region8: #{tpu_custom_call.1} parent=1 // pred_region
      %s25 = ssub.s32 4608, 4608
      %26 = vsyncadd [#allocation6], %s25
      %s27 = sshll.u32 [#allocation5], 4
      %s28 = int_to_ptr.vmem [resolvable:$true] %s27
      %33 = dma.hbm_to_vmem [thread:$0]  %s1, 4608, %s28, [#allocation6], 128, 128, 8
    $region9: #{tpu_custom_call.1} parent=1 // pred_fallthru
      _
    // Predicated region
    $region10: #{tpu_custom_call.1} parent=1 // pred_check
      _
    $region11: #{tpu_custom_call.1} parent=1 // pred_check_branch
      %35 = sbr.rel (0) target = $region13
    $region12: #{tpu_custom_call.1} parent=1 // pred_region
      %36 = dma.done [#allocation3], 128
    $region13: #{tpu_custom_call.1} parent=1 // pred_fallthru
      _
    // Predicated region
    $region14: #{tpu_custom_call.1} parent=1 // pred_check
      _
    $region15: #{tpu_custom_call.1} parent=1 // pred_check_branch
      %38 = sbr.rel (0) target = $region17
    $region16: #{tpu_custom_call.1} parent=1 // pred_region
      %39 = dma.done [#allocation6], 4608
    $region17: #{tpu_custom_call.1} parent=1 // pred_fallthru
      _
    %v40 = vld [vmem:[#allocation2] sm:$0x1]
    %v41 = vld [vmem:[#allocation2 + $0x1] sm:$0x1]
    %v42 = vld [vmem:[#allocation2 + $0x2] sm:$0x1]
    %v43 = vld [vmem:[#allocation2 + $0x3] sm:$0x1]
    %v44 = vld [vmem:[#allocation2 + $0x4] sm:$0x1]
    %v45 = vld [vmem:[#allocation2 + $0x5] sm:$0x1]
    %v46 = vld [vmem:[#allocation2 + $0x6] sm:$0x1]
    %v47 = vld [vmem:[#allocation2 + $0x7] sm:$0x1]
    %v48 = vld [vmem:[#allocation5] sm:$0xff]
    %v49 = vld [vmem:[#allocation5 + $0x8] sm:$0x1]
    %v50 = vlaneseq
    %v51 = vshrl.u32 %v50, 7
    %v52 = vsub.s32 0, %v51
    %v53 = vrot.slane %v49, %v52
    %v62 = vcombine.low %v40, %v41
    %v63 = vcombine.low %v42, %v43
    %v64 = vcombine.low %v44, %v45
    %v65 = vcombine.low %v46, %v47
    %v67 = vunpack.c.l.s4 1966171168
    %v68 = vunpack.c.0.s8 %v67
    %v69 = vlaneseq
    %v70 = vshrl.u32 %v69, 7
    %v71 = vsub.s32 %v68, %v70
    %v72 = vrot.slane %v62, %v71
    %v74 = vunpack.c.l.s4 1966171168
    %v75 = vunpack.c.0.s8 %v74
    %v76 = vlaneseq
    %v77 = vshrl.u32 %v76, 7
    %v78 = vsub.s32 %v75, %v77
    %v79 = vrot.slane %v63, %v78
    %v81 = vunpack.c.l.s4 1966171168
    %v82 = vunpack.c.0.s8 %v81
    %v83 = vlaneseq
    %v84 = vshrl.u32 %v83, 7
    %v85 = vsub.s32 %v82, %v84
    %v86 = vrot.slane %v64, %v85
    %v88 = vunpack.c.l.s4 1966171168
    %v89 = vunpack.c.0.s8 %v88
    %v90 = vlaneseq
    %v91 = vshrl.u32 %v90, 7
    %v92 = vsub.s32 %v89, %v91
    %v93 = vrot.slane %v65, %v92
    %v94 = vcombine.low %v72, %v79
    %v95 = vcombine.low %v86, %v93
    %v97 = vunpack.c.l.s4 1966171168
    %v98 = vunpack.c.0.s8 %v97
    %v99 = vlaneseq
    %v100 = vshrl.u32 %v99, 7
    %v101 = vsub.s32 %v98, %v100
    %v102 = vrot.slane %v94, %v101
    %v104 = vunpack.c.l.s4 1966171168
    %v105 = vunpack.c.0.s8 %v104
    %v106 = vlaneseq
    %v107 = vshrl.u32 %v106, 7
    %v108 = vsub.s32 %v105, %v107
    %v109 = vrot.slane %v95, %v108
    %v110 = vcombine.low %v102, %v109
    %vm111 = vcmask 64512
    %v112 = vsel %vm111, %v110, 0
    %114 = vmatprep.subr.mxu0 0.0
    %115 = vmatpush1.msra.mxu0 0.0
    %116 = vmatprep.subr.mxu0 0.0
    %117 = vmatpush1.msra.mxu0 0.0
    %118 = vmatprep.subr.mxu0 0.0
    %119 = vmatpush1.msra.mxu0 0.0
    %120 = vmatprep.subr.mxu0 0.0
    %121 = vmatpush1.msra.mxu0 0.0
    %122 = vmatprep.subr.mxu0 0.0
    %123 = vmatpush1.msra.mxu0 0.0
    %124 = vmatprep.subr.mxu0 0.0
    %125 = vmatpush1.msra.mxu0 0.0
    %126 = vmatprep.subr.mxu0 0.0
    %127 = vmatpush1.msra.mxu0 0.0
    %128 = vmatprep.subr.mxu0 0.0
    %129 = vmatpush1.msra.mxu0 0.0
    %130 = vmatprep.subr.mxu0 0.0
    %131 = vmatpush1.msra.mxu0 0.0
    %132 = vmatprep.subr.mxu0 0.0
    %133 = vmatpush1.msra.mxu0 0.0
    %134 = vmatprep.subr.mxu0 0.0
    %135 = vmatpush1.msra.mxu0 0.0
    %136 = vmatprep.subr.mxu0 0.0
    %137 = vmatpush1.msra.mxu0 0.0
    %138 = vmatprep.subr.mxu0 0.0
    %139 = vmatpush1.msra.mxu0 0.0
    %140 = vmatprep.subr.mxu0 0.0
    %141 = vmatpush1.msra.mxu0 0.0
    %142 = vmatprep.subr.mxu0 0.0
    %143 = vmatpush1.msra.mxu0 0.0
    %144 = vmatprep.subr.mxu0 0.0
    %145 = vmatpush1.msra.mxu0 %v48
    %146 = vmatprep.subr.mxu0 0.0
    %147 = vmatpush2.msra.mxu0 0.0
    %148 = vmatprep.subr.mxu0 0.0
    %149 = vmatpush2.msra.mxu0 0.0
    %150 = vmatprep.subr.mxu0 0.0
    %151 = vmatpush2.msra.mxu0 0.0
    %152 = vmatprep.subr.mxu0 0.0
    %153 = vmatpush2.msra.mxu0 0.0
    %154 = vmatprep.subr.mxu0 0.0
    %155 = vmatpush2.msra.mxu0 0.0
    %156 = vmatprep.subr.mxu0 0.0
    %157 = vmatpush2.msra.mxu0 0.0
    %158 = vmatprep.subr.mxu0 0.0
    %159 = vmatpush2.msra.mxu0 0.0
    %160 = vmatprep.subr.mxu0 0.0
    %161 = vmatpush2.msra.mxu0 0.0
    %162 = vmatprep.subr.mxu0 0.0
    %163 = vmatpush2.msra.mxu0 0.0
    %164 = vmatprep.subr.mxu0 0.0
    %165 = vmatpush2.msra.mxu0 0.0
    %166 = vmatprep.subr.mxu0 0.0
    %167 = vmatpush2.msra.mxu0 0.0
    %168 = vmatprep.subr.mxu0 0.0
    %169 = vmatpush2.msra.mxu0 0.0
    %170 = vmatprep.subr.mxu0 0.0
    %171 = vmatpush2.msra.mxu0 0.0
    %172 = vmatprep.subr.mxu0 0.0
    %173 = vmatpush2.msra.mxu0 0.0
    %174 = vmatprep.subr.mxu0 0.0
    %175 = vmatpush2.msra.mxu0 0.0
    %176 = vmatprep.subr.mxu0 0.0
    %177 = vmatpush2.msra.mxu0 0.0
    %178 = vmatprep.mubr.f32.mxu0 0.0
    %179 = vmatmul.mubr.f32.gmra.mxu0 %v112
    %v180 = vpop.f32.mrf.mxu0
    %v181 = vadd.f32 %v53, %v180
    %v182 = vpop.f32.mrf.mxu0
    %183 = vdwg.mxu0
    %v184 = vld [vmem:[#allocation5 + $0x10] sm:$0xff]
    %v185 = vld [vmem:[#allocation5 + $0x18] sm:$0xff]
    %v186 = vld [vmem:[#allocation5 + $0x20] sm:$0xff]
    %v187 = vld [vmem:[#allocation5 + $0x28] sm:$0xff]
    %v188 = vld [vmem:[#allocation5 + $0x30] sm:$0xff]
    %v189 = vld [vmem:[#allocation5 + $0x38] sm:$0xff]
    %v190 = vld [vmem:[#allocation5 + $0x40] sm:$0xff]
    %v191 = vld [vmem:[#allocation5 + $0x48] sm:$0xff]
    %v192 = vld [vmem:[#allocation5 + $0x50] sm:$0xff]
    %v193 = vld [vmem:[#allocation5 + $0x58] sm:$0xff]
    %v194 = vld [vmem:[#allocation5 + $0x60] sm:$0xff]
    %v195 = vld [vmem:[#allocation5 + $0x68] sm:$0xff]
    %v196 = vld [vmem:[#allocation5 + $0x70] sm:$0xff]
    %v197 = vld [vmem:[#allocation5 + $0x78] sm:$0xff]
    %v198 = vld [vmem:[#allocation5 + $0x80] sm:$0xff]
    %v199 = vld [vmem:[#allocation5 + $0x88] sm:$0xff]
    %v200 = vld [vmem:[#allocation5 + $0x90] sm:$0x1]
    %v201 = vlaneseq
    %v202 = vshrl.u32 %v201, 7
    %v203 = vsub.s32 0, %v202
    %v204 = vrot.slane %v200, %v203
    %205 = vmatprep.subr.mxu0 0.0
    %206 = vmatpush1.msra.mxu0 %v199
    %207 = vmatprep.subr.mxu0 0.0
    %208 = vmatpush1.msra.mxu0 %v198
    %209 = vmatprep.subr.mxu0 0.0
    %210 = vmatpush1.msra.mxu0 %v197
    %211 = vmatprep.subr.mxu0 0.0
    %212 = vmatpush1.msra.mxu0 %v196
    %213 = vmatprep.subr.mxu0 0.0
    %214 = vmatpush1.msra.mxu0 %v195
    %215 = vmatprep.subr.mxu0 0.0
    %216 = vmatpush1.msra.mxu0 %v194
    %217 = vmatprep.subr.mxu0 0.0
    %218 = vmatpush1.msra.mxu0 %v193
    %219 = vmatprep.subr.mxu0 0.0
    %220 = vmatpush1.msra.mxu0 %v192
    %221 = vmatprep.subr.mxu0 0.0
    %222 = vmatpush1.msra.mxu0 %v191
    %223 = vmatprep.subr.mxu0 0.0
    %224 = vmatpush1.msra.mxu0 %v190
    %225 = vmatprep.subr.mxu0 0.0
    %226 = vmatpush1.msra.mxu0 %v189
    %227 = vmatprep.subr.mxu0 0.0
    %228 = vmatpush1.msra.mxu0 %v188
    %229 = vmatprep.subr.mxu0 0.0
    %230 = vmatpush1.msra.mxu0 %v187
    %231 = vmatprep.subr.mxu0 0.0
    %232 = vmatpush1.msra.mxu0 %v186
    %233 = vmatprep.subr.mxu0 0.0
    %234 = vmatpush1.msra.mxu0 %v185
    %235 = vmatprep.subr.mxu0 0.0
    %236 = vmatpush1.msra.mxu0 %v184
    %237 = vmatprep.subr.mxu0 0.0
    %238 = vmatpush2.msra.mxu0 0.0
    %239 = vmatprep.subr.mxu0 0.0
    %240 = vmatpush2.msra.mxu0 0.0
    %241 = vmatprep.subr.mxu0 0.0
    %242 = vmatpush2.msra.mxu0 0.0
    %243 = vmatprep.subr.mxu0 0.0
    %244 = vmatpush2.msra.mxu0 0.0
    %245 = vmatprep.subr.mxu0 0.0
    %246 = vmatpush2.msra.mxu0 0.0
    %247 = vmatprep.subr.mxu0 0.0
    %248 = vmatpush2.msra.mxu0 0.0
    %249 = vmatprep.subr.mxu0 0.0
    %250 = vmatpush2.msra.mxu0 0.0
    %251 = vmatprep.subr.mxu0 0.0
    %252 = vmatpush2.msra.mxu0 0.0
    %253 = vmatprep.subr.mxu0 0.0
    %254 = vmatpush2.msra.mxu0 0.0
    %255 = vmatprep.subr.mxu0 0.0
    %256 = vmatpush2.msra.mxu0 0.0
    %257 = vmatprep.subr.mxu0 0.0
    %258 = vmatpush2.msra.mxu0 0.0
    %259 = vmatprep.subr.mxu0 0.0
    %260 = vmatpush2.msra.mxu0 0.0
    %261 = vmatprep.subr.mxu0 0.0
    %262 = vmatpush2.msra.mxu0 0.0
    %263 = vmatprep.subr.mxu0 0.0
    %264 = vmatpush2.msra.mxu0 0.0
    %265 = vmatprep.subr.mxu0 0.0
    %266 = vmatpush2.msra.mxu0 0.0
    %267 = vmatprep.subr.mxu0 0.0
    %268 = vmatpush2.msra.mxu0 0.0
    %269 = vmatprep.mubr.f32.mxu0 0.0
    %270 = vmatmul.mubr.f32.gmra.mxu0 %v181
    %v271 = vpop.f32.mrf.mxu0
    %v272 = vadd.f32 %v204, %v271
    %v273 = vpop.f32.mrf.mxu0
    %274 = vdwg.mxu0
    %v275 = vmax.f32 %v272, 0.0
    %v276 = vld [vmem:[#allocation5 + $0x98] sm:$0xff]
    %v277 = vld [vmem:[#allocation5 + $0xa0] sm:$0xff]
    %v278 = vld [vmem:[#allocation5 + $0xa8] sm:$0xff]
    %v279 = vld [vmem:[#allocation5 + $0xb0] sm:$0xff]
    %v280 = vld [vmem:[#allocation5 + $0xb8] sm:$0xff]
    %v281 = vld [vmem:[#allocation5 + $0xc0] sm:$0xff]
    %v282 = vld [vmem:[#allocation5 + $0xc8] sm:$0xff]
    %v283 = vld [vmem:[#allocation5 + $0xd0] sm:$0xff]
    %v284 = vld [vmem:[#allocation5 + $0xd8] sm:$0xff]
    %v285 = vld [vmem:[#allocation5 + $0xe0] sm:$0xff]
    %v286 = vld [vmem:[#allocation5 + $0xe8] sm:$0xff]
    %v287 = vld [vmem:[#allocation5 + $0xf0] sm:$0xff]
    %v288 = vld [vmem:[#allocation5 + $0xf8] sm:$0xff]
    %v289 = vld [vmem:[#allocation5 + $0x100] sm:$0xff]
    %v290 = vld [vmem:[#allocation5 + $0x108] sm:$0xff]
    %v291 = vld [vmem:[#allocation5 + $0x110] sm:$0xff]
    %v292 = vld [vmem:[#allocation5 + $0x118] sm:$0x1]
    %v293 = vlaneseq
    %v294 = vshrl.u32 %v293, 7
    %v295 = vsub.s32 0, %v294
    %v296 = vrot.slane %v292, %v295
    %297 = vmatprep.subr.mxu0 0.0
    %298 = vmatpush1.msra.mxu0 %v291
    %299 = vmatprep.subr.mxu0 0.0
    %300 = vmatpush1.msra.mxu0 %v290
    %301 = vmatprep.subr.mxu0 0.0
    %302 = vmatpush1.msra.mxu0 %v289
    %303 = vmatprep.subr.mxu0 0.0
    %304 = vmatpush1.msra.mxu0 %v288
    %305 = vmatprep.subr.mxu0 0.0
    %306 = vmatpush1.msra.mxu0 %v287
    %307 = vmatprep.subr.mxu0 0.0
    %308 = vmatpush1.msra.mxu0 %v286
    %309 = vmatprep.subr.mxu0 0.0
    %310 = vmatpush1.msra.mxu0 %v285
    %311 = vmatprep.subr.mxu0 0.0
    %312 = vmatpush1.msra.mxu0 %v284
    %313 = vmatprep.subr.mxu0 0.0
    %314 = vmatpush1.msra.mxu0 %v283
    %315 = vmatprep.subr.mxu0 0.0
    %316 = vmatpush1.msra.mxu0 %v282
    %317 = vmatprep.subr.mxu0 0.0
    %318 = vmatpush1.msra.mxu0 %v281
    %319 = vmatprep.subr.mxu0 0.0
    %320 = vmatpush1.msra.mxu0 %v280
    %321 = vmatprep.subr.mxu0 0.0
    %322 = vmatpush1.msra.mxu0 %v279
    %323 = vmatprep.subr.mxu0 0.0
    %324 = vmatpush1.msra.mxu0 %v278
    %325 = vmatprep.subr.mxu0 0.0
    %326 = vmatpush1.msra.mxu0 %v277
    %327 = vmatprep.subr.mxu0 0.0
    %328 = vmatpush1.msra.mxu0 %v276
    %329 = vmatprep.subr.mxu0 0.0
    %330 = vmatpush2.msra.mxu0 0.0
    %331 = vmatprep.subr.mxu0 0.0
    %332 = vmatpush2.msra.mxu0 0.0
    %333 = vmatprep.subr.mxu0 0.0
    %334 = vmatpush2.msra.mxu0 0.0
    %335 = vmatprep.subr.mxu0 0.0
    %336 = vmatpush2.msra.mxu0 0.0
    %337 = vmatprep.subr.mxu0 0.0
    %338 = vmatpush2.msra.mxu0 0.0
    %339 = vmatprep.subr.mxu0 0.0
    %340 = vmatpush2.msra.mxu0 0.0
    %341 = vmatprep.subr.mxu0 0.0
    %342 = vmatpush2.msra.mxu0 0.0
    %343 = vmatprep.subr.mxu0 0.0
    %344 = vmatpush2.msra.mxu0 0.0
    %345 = vmatprep.subr.mxu0 0.0
    %346 = vmatpush2.msra.mxu0 0.0
    %347 = vmatprep.subr.mxu0 0.0
    %348 = vmatpush2.msra.mxu0 0.0
    %349 = vmatprep.subr.mxu0 0.0
    %350 = vmatpush2.msra.mxu0 0.0
    %351 = vmatprep.subr.mxu0 0.0
    %352 = vmatpush2.msra.mxu0 0.0
    %353 = vmatprep.subr.mxu0 0.0
    %354 = vmatpush2.msra.mxu0 0.0
    %355 = vmatprep.subr.mxu0 0.0
    %356 = vmatpush2.msra.mxu0 0.0
    %357 = vmatprep.subr.mxu0 0.0
    %358 = vmatpush2.msra.mxu0 0.0
    %359 = vmatprep.subr.mxu0 0.0
    %360 = vmatpush2.msra.mxu0 0.0
    %361 = vmatprep.mubr.f32.mxu0 0.0
    %362 = vmatmul.mubr.f32.gmra.mxu0 %v275
    %v363 = vpop.f32.mrf.mxu0
    %v364 = vadd.f32 %v296, %v363
    %v365 = vpop.f32.mrf.mxu0
    %366 = vdwg.mxu0
    %367 = vst.msk [vmem:[#allocation7] sm:$0xff] %vm111, %v364
    // Predicated region
    $region18: #{tpu_custom_call.1} parent=1 // pred_check
      _
    $region19: #{tpu_custom_call.1} parent=1 // pred_check_branch
      %369 = sbr.rel (0) target = $region21
    $region20: #{tpu_custom_call.1} parent=1 // pred_region
      %s371 = ssub.s32 128, 128
      %372 = vsyncadd [#allocation4], %s371
      %s374 = sshll.u32 [#allocation7], 4
      %s375 = int_to_ptr.vmem [resolvable:$true] %s374
      %377 = dma.vmem_to_hbm [thread:$0]  %s375, 128, %s2, [#allocation4]
    $region21: #{tpu_custom_call.1} parent=1 // pred_fallthru
      _
    // Predicated region
    $region22: #{tpu_custom_call.1} parent=1 // pred_check
      _
    $region23: #{tpu_custom_call.1} parent=1 // pred_check_branch
      %379 = sbr.rel (0) target = $region25
    $region24: #{tpu_custom_call.1} parent=1 // pred_region
      %380 = dma.done [#allocation4], 128
    $region25: #{tpu_custom_call.1} parent=1 // pred_fallthru
      _
    %381 = vsyncpa [#allocation3], 1
    %382 = vsyncpa [#allocation6], 1
    %383 = vsyncpa [#allocation4], 1

</llo_original>
